<compile_context>
chip_gen: v7x
topology: tpu7x:2x2x1
jax: 0.10.0
libtpu: 0.0.40
codegen_flags: <defaults>
</compile_context>

<pallas_src>
import numpy as np
import jax
import jax.numpy as jnp
from jax.experimental import pallas as pl
from jax.experimental.pallas import tpu as pltpu

LANES = 128


def _round_up(x, m):
    return ((x + m - 1) // m) * m


def _build_tile_schedule(starts, chunk_len, n_frames, tile_frames):
    """Host-side schedule: which chunks cover each frame tile and at what offset."""
    starts = [int(s) for s in starts]
    L, TF = int(chunk_len), int(tile_frames)
    n_tiles = max(1, -(-n_frames // TF))
    per_tile = []
    for i in range(n_tiles):
        t0, t1 = i * TF, (i + 1) * TF
        per_tile.append([c for c, s in enumerate(starts) if s < t1 and s + L > t0])
    S = max(1, max(len(cs) for cs in per_tile))
    chunk_sel = np.zeros((n_tiles, S), np.int32)        # dummy slots read chunk 0
    src_off = np.zeros((n_tiles, S), np.int32)          # 128-aligned DMA offsets
    rel_start = np.full((n_tiles, S), TF, np.int32)     # sentinel => empty mask
    for i, cs in enumerate(per_tile):
        for j, c in enumerate(cs):
            s = starts[c]
            chunk_sel[i, j] = c
            rel_start[i, j] = s - i * TF
            # row c of the shifted score buffer stores tfx[c, r] at column
            # TF + (s % 128) + r, so the DMA offset for tile i is 128-aligned:
            src_off[i, j] = TF * (i + 1) - LANES * (s // LANES)
    # Flattened (long axis only) to keep the SMEM footprint minimal.
    return (chunk_sel.reshape(-1), src_off.reshape(-1), rel_start.reshape(-1),
            S, n_tiles)


def _make_overlap_kernel(S, TF, L):
    def kernel(chunk_sel_ref, src_off_ref, rel_start_ref,    # SMEM (scalar prefetch)
               scores_hbm,                                   # pl.ANY: (n_chunks, W) f32
               out_ref,                                      # VMEM (1, TF) f32
               buf, sem):                                    # VMEM (S,1,TF), DMA sems (S,)
        i = pl.program_id(0)
        copies, rels = [], []
        # Issue all gathers for this frame tile (all scalar reads before any wait).
        for j in range(S):
            c = chunk_sel_ref[i * S + j]
            off = pl.multiple_of(src_off_ref[i * S + j], LANES)
            rels.append(rel_start_ref[i * S + j])
            cp = pltpu.make_async_copy(
                scores_hbm.at[pl.ds(c, 1), pl.ds(off, TF)], buf.at[j], sem.at[j])
            cp.start()
            copies.append(cp)

        lane = jax.lax.broadcasted_iota(jnp.int32, (1, TF), 1)  # frame index in tile
        acc = jnp.zeros((1, TF), jnp.float32)
        cnt = jnp.zeros((1, TF), jnp.float32)
        for j in range(S):
            copies[j].wait()
            covered = (lane >= rels[j]) & (lane < rels[j] + L)
            acc = acc + jnp.where(covered, buf[j], 0.0)
            cnt = cnt + covered.astype(jnp.float32)
        # Fused normalize: data / max(k, 1).
        out_ref[...] = acc / jnp.maximum(cnt, 1.0)

    return kernel


def slide_overlap_average(fired_flag, starts, n_frames, *, dimension=2,
                          tile_frames=128):
    """Fused Pallas version of Model.slide()'s tfX -> overlap-add -> normalize path."""
    n_chunks, L, _ = fired_flag.shape
    TF = int(tile_frames)
    assert TF % LANES == 0

    # (1) Only the last fired_flag channel is used; channel duplication is deferred
    #     to the very end (the duplicated tfX channel carries no information).
    tfx = fired_flag[:, :, -1].astype(jnp.float32)            # (n_chunks, L), lane-dense

    # (2) Place each chunk row at lane phase (start % 128) inside a zero-padded row
    #     so that every in-kernel DMA gather window is 128-lane aligned.
    starts_i = [int(s) for s in starts]
    phase = jnp.asarray([s % LANES for s in starts_i], jnp.int32)[:, None]
    W = _round_up(2 * TF + LANES + int(L), LANES)
    col = jnp.arange(W, dtype=jnp.int32)[None, :]
    src = col - (TF + phase)                                  # (n_chunks, W)
    valid = (src >= 0) & (src < L)
    scores = jnp.where(
        valid, jnp.take_along_axis(tfx, jnp.clip(src, 0, L - 1), axis=1), 0.0)

    # (3) Host-side tile schedule -> SMEM via scalar prefetch.
    chunk_sel, src_off, rel_start, S, n_tiles = _build_tile_schedule(
        starts_i, L, int(n_frames), TF)
    nf_pad = n_tiles * TF

    grid_spec = pltpu.PrefetchScalarGridSpec(
        num_scalar_prefetch=3,
        grid=(n_tiles,),
        in_specs=[pl.BlockSpec(memory_space=pl.ANY)],          # chunk scores stay in HBM
        out_specs=pl.BlockSpec((1, TF), lambda i, cs, so, rs: (0, i)),
        scratch_shapes=[
            pltpu.VMEM((S, 1, TF), jnp.float32),
            pltpu.SemaphoreType.DMA((S,)),
        ],
    )
    out_row = pl.pallas_call(
        _make_overlap_kernel(S, TF, int(L)),
        out_shape=jax.ShapeDtypeStruct((1, nf_pad), jnp.float32),
        grid_spec=grid_spec,
        compiler_params=pltpu.CompilerParams(
            dimension_semantics=("parallel",),
        ),
    )(jnp.asarray(chunk_sel), jnp.asarray(src_off), jnp.asarray(rel_start), scores)

    per_frame = out_row[0, :n_frames]                          # (n_frames,)
    # tfX channel duplication of the reference, applied once at the very end.
    return jnp.broadcast_to(per_frame[:, None], (n_frames, dimension))


if __name__ == "__main__":
    key = jax.random.PRNGKey(0)

    # Small shapes: 4 sliding-window chunks, 64 frames/chunk, 4 fired_flag channels.
    n_chunks, L, C = 4, 64, 4
    stride = 32
    starts = [c * stride for c in range(n_chunks)]
    n_frames = starts[-1] + L
    dimension = 2

    fired_flag = jax.random.uniform(key, (n_chunks, L, C), dtype=jnp.float32)

    out = slide_overlap_average(fired_flag, starts, n_frames,
                                dimension=dimension, tile_frames=128)
    out = jax.block_until_ready(out)

    # Pure numpy reference of slide()'s tfX -> overlap-add -> normalize path.
    ff = np.asarray(jax.device_get(fired_flag))
    tfx_ref = np.stack([ff[:, :, -1], ff[:, :, -1]], axis=-1)   # (n_chunks, L, 2)
    data = np.zeros((n_frames, dimension), np.float32)
    k = np.zeros((n_frames, 1), np.int32)
    for c, s in enumerate(starts):
        data[s:s + L] += tfx_ref[c]
        k[s:s + L] += 1
    ref = data / np.maximum(k, 1)

    assert out.shape == ref.shape
    assert np.allclose(np.asarray(out), ref, atol=1e-5), "mismatch vs reference"
    print("KERNEL_OK")
</pallas_src>

<mosaic_0001>
module attributes {stable_mosaic.version = 11 : i64} {
  func.func @kernel(%arg0: i32, %arg1: memref<8xi32, #tpu.memory_space<smem>>, %arg2: memref<8xi32, #tpu.memory_space<smem>>, %arg3: memref<8xi32, #tpu.memory_space<smem>>, %arg4: memref<4x512xf32, #tpu.memory_space<any>>, %arg5: memref<1x128xf32, #tpu.memory_space<vmem>>, %arg6: memref<4x1x128xf32, #tpu.memory_space<vmem>>, %arg7: memref<4x!tpu.dma_semaphore, #tpu.memory_space<semaphore_mem>>) attributes {dimension_semantics = [#tpu.dimension_semantics<parallel>], iteration_bounds = array<i64: 2>, scalar_prefetch = 3 : i64, scratch_operands = 2 : i64, tpu.core_type = #tpu.core_type<tc>, window_params = [{}, {transform_indices = @transform_1, window_bounds = array<i64: 1, 128>}]} {
    %c4_i32 = arith.constant 4 : i32
    %0 = arith.muli %arg0, %c4_i32 : i32
    %c0_i32 = arith.constant 0 : i32
    %1 = arith.addi %0, %c0_i32 : i32
    %2 = arith.index_cast %1 : i32 to index
    %3 = memref.load %arg1[%2] : memref<8xi32, #tpu.memory_space<smem>>
    %c4_i32_0 = arith.constant 4 : i32
    %4 = arith.muli %arg0, %c4_i32_0 : i32
    %c0_i32_1 = arith.constant 0 : i32
    %5 = arith.addi %4, %c0_i32_1 : i32
    %6 = arith.index_cast %5 : i32 to index
    %7 = memref.load %arg2[%6] : memref<8xi32, #tpu.memory_space<smem>>
    %8 = tpu.assume_multiple %7, 128 : i32
    %c4_i32_2 = arith.constant 4 : i32
    %9 = arith.muli %arg0, %c4_i32_2 : i32
    %c0_i32_3 = arith.constant 0 : i32
    %10 = arith.addi %9, %c0_i32_3 : i32
    %11 = arith.index_cast %10 : i32 to index
    %12 = memref.load %arg3[%11] : memref<8xi32, #tpu.memory_space<smem>>
    %c0_i32_4 = arith.constant 0 : i32
    %c0_i32_5 = arith.constant 0 : i32
    %13 = tpu.memref_slice %arg4[%3, %8] : memref<4x512xf32, #tpu.memory_space<any>> -> memref<1x128xf32, #tpu.memory_space<any>>
    %c0_i32_6 = arith.constant 0 : i32
    %c0_i32_7 = arith.constant 0 : i32
    %14 = tpu.memref_slice %arg6[%c0_i32_4, %c0_i32_6, %c0_i32_7] : memref<4x1x128xf32, #tpu.memory_space<vmem>> -> memref<1x1x128xf32, #tpu.memory_space<vmem>>
    %15 = tpu.memref_squeeze %14 : memref<1x1x128xf32, #tpu.memory_space<vmem>> -> memref<1x128xf32, #tpu.memory_space<vmem>>
    %16 = tpu.memref_slice %arg7[%c0_i32_5] : memref<4x!tpu.dma_semaphore, #tpu.memory_space<semaphore_mem>> -> memref<1x!tpu.dma_semaphore, #tpu.memory_space<semaphore_mem>>
    %17 = tpu.memref_squeeze %16 : memref<1x!tpu.dma_semaphore, #tpu.memory_space<semaphore_mem>> -> memref<!tpu.dma_semaphore, #tpu.memory_space<semaphore_mem>>
    tpu.enqueue_dma source(%13 : memref<1x128xf32, #tpu.memory_space<any>>) target(%15 : memref<1x128xf32, #tpu.memory_space<vmem>>) target_semaphore(%17 : memref<!tpu.dma_semaphore, #tpu.memory_space<semaphore_mem>>)
    %c4_i32_8 = arith.constant 4 : i32
    %18 = arith.muli %arg0, %c4_i32_8 : i32
    %c1_i32 = arith.constant 1 : i32
    %19 = arith.addi %18, %c1_i32 : i32
    %20 = arith.index_cast %19 : i32 to index
    %21 = memref.load %arg1[%20] : memref<8xi32, #tpu.memory_space<smem>>
    %c4_i32_9 = arith.constant 4 : i32
    %22 = arith.muli %arg0, %c4_i32_9 : i32
    %c1_i32_10 = arith.constant 1 : i32
    %23 = arith.addi %22, %c1_i32_10 : i32
    %24 = arith.index_cast %23 : i32 to index
    %25 = memref.load %arg2[%24] : memref<8xi32, #tpu.memory_space<smem>>
    %26 = tpu.assume_multiple %25, 128 : i32
    %c4_i32_11 = arith.constant 4 : i32
    %27 = arith.muli %arg0, %c4_i32_11 : i32
    %c1_i32_12 = arith.constant 1 : i32
    %28 = arith.addi %27, %c1_i32_12 : i32
    %29 = arith.index_cast %28 : i32 to index
    %30 = memref.load %arg3[%29] : memref<8xi32, #tpu.memory_space<smem>>
    %c1_i32_13 = arith.constant 1 : i32
    %c1_i32_14 = arith.constant 1 : i32
    %31 = tpu.memref_slice %arg4[%21, %26] : memref<4x512xf32, #tpu.memory_space<any>> -> memref<1x128xf32, #tpu.memory_space<any>>
    %c0_i32_15 = arith.constant 0 : i32
    %c0_i32_16 = arith.constant 0 : i32
    %32 = tpu.memref_slice %arg6[%c1_i32_13, %c0_i32_15, %c0_i32_16] : memref<4x1x128xf32, #tpu.memory_space<vmem>> -> memref<1x1x128xf32, #tpu.memory_space<vmem>>
    %33 = tpu.memref_squeeze %32 : memref<1x1x128xf32, #tpu.memory_space<vmem>> -> memref<1x128xf32, #tpu.memory_space<vmem>>
    %34 = tpu.memref_slice %arg7[%c1_i32_14] : memref<4x!tpu.dma_semaphore, #tpu.memory_space<semaphore_mem>> -> memref<1x!tpu.dma_semaphore, #tpu.memory_space<semaphore_mem>>
    %35 = tpu.memref_squeeze %34 : memref<1x!tpu.dma_semaphore, #tpu.memory_space<semaphore_mem>> -> memref<!tpu.dma_semaphore, #tpu.memory_space<semaphore_mem>>
    tpu.enqueue_dma source(%31 : memref<1x128xf32, #tpu.memory_space<any>>) target(%33 : memref<1x128xf32, #tpu.memory_space<vmem>>) target_semaphore(%35 : memref<!tpu.dma_semaphore, #tpu.memory_space<semaphore_mem>>)
    %c4_i32_17 = arith.constant 4 : i32
    %36 = arith.muli %arg0, %c4_i32_17 : i32
    %c2_i32 = arith.constant 2 : i32
    %37 = arith.addi %36, %c2_i32 : i32
    %38 = arith.index_cast %37 : i32 to index
    %39 = memref.load %arg1[%38] : memref<8xi32, #tpu.memory_space<smem>>
    %c4_i32_18 = arith.constant 4 : i32
    %40 = arith.muli %arg0, %c4_i32_18 : i32
    %c2_i32_19 = arith.constant 2 : i32
    %41 = arith.addi %40, %c2_i32_19 : i32
    %42 = arith.index_cast %41 : i32 to index
    %43 = memref.load %arg2[%42] : memref<8xi32, #tpu.memory_space<smem>>
    %44 = tpu.assume_multiple %43, 128 : i32
    %c4_i32_20 = arith.constant 4 : i32
    %45 = arith.muli %arg0, %c4_i32_20 : i32
    %c2_i32_21 = arith.constant 2 : i32
    %46 = arith.addi %45, %c2_i32_21 : i32
    %47 = arith.index_cast %46 : i32 to index
    %48 = memref.load %arg3[%47] : memref<8xi32, #tpu.memory_space<smem>>
    %c2_i32_22 = arith.constant 2 : i32
    %c2_i32_23 = arith.constant 2 : i32
    %49 = tpu.memref_slice %arg4[%39, %44] : memref<4x512xf32, #tpu.memory_space<any>> -> memref<1x128xf32, #tpu.memory_space<any>>
    %c0_i32_24 = arith.constant 0 : i32
    %c0_i32_25 = arith.constant 0 : i32
    %50 = tpu.memref_slice %arg6[%c2_i32_22, %c0_i32_24, %c0_i32_25] : memref<4x1x128xf32, #tpu.memory_space<vmem>> -> memref<1x1x128xf32, #tpu.memory_space<vmem>>
    %51 = tpu.memref_squeeze %50 : memref<1x1x128xf32, #tpu.memory_space<vmem>> -> memref<1x128xf32, #tpu.memory_space<vmem>>
    %52 = tpu.memref_slice %arg7[%c2_i32_23] : memref<4x!tpu.dma_semaphore, #tpu.memory_space<semaphore_mem>> -> memref<1x!tpu.dma_semaphore, #tpu.memory_space<semaphore_mem>>
    %53 = tpu.memref_squeeze %52 : memref<1x!tpu.dma_semaphore, #tpu.memory_space<semaphore_mem>> -> memref<!tpu.dma_semaphore, #tpu.memory_space<semaphore_mem>>
    tpu.enqueue_dma source(%49 : memref<1x128xf32, #tpu.memory_space<any>>) target(%51 : memref<1x128xf32, #tpu.memory_space<vmem>>) target_semaphore(%53 : memref<!tpu.dma_semaphore, #tpu.memory_space<semaphore_mem>>)
    %c4_i32_26 = arith.constant 4 : i32
    %54 = arith.muli %arg0, %c4_i32_26 : i32
    %c3_i32 = arith.constant 3 : i32
    %55 = arith.addi %54, %c3_i32 : i32
    %56 = arith.index_cast %55 : i32 to index
    %57 = memref.load %arg1[%56] : memref<8xi32, #tpu.memory_space<smem>>
    %c4_i32_27 = arith.constant 4 : i32
    %58 = arith.muli %arg0, %c4_i32_27 : i32
    %c3_i32_28 = arith.constant 3 : i32
    %59 = arith.addi %58, %c3_i32_28 : i32
    %60 = arith.index_cast %59 : i32 to index
    %61 = memref.load %arg2[%60] : memref<8xi32, #tpu.memory_space<smem>>
    %62 = tpu.assume_multiple %61, 128 : i32
    %c4_i32_29 = arith.constant 4 : i32
    %63 = arith.muli %arg0, %c4_i32_29 : i32
    %c3_i32_30 = arith.constant 3 : i32
    %64 = arith.addi %63, %c3_i32_30 : i32
    %65 = arith.index_cast %64 : i32 to index
    %66 = memref.load %arg3[%65] : memref<8xi32, #tpu.memory_space<smem>>
    %c3_i32_31 = arith.constant 3 : i32
    %c3_i32_32 = arith.constant 3 : i32
    %67 = tpu.memref_slice %arg4[%57, %62] : memref<4x512xf32, #tpu.memory_space<any>> -> memref<1x128xf32, #tpu.memory_space<any>>
    %c0_i32_33 = arith.constant 0 : i32
    %c0_i32_34 = arith.constant 0 : i32
    %68 = tpu.memref_slice %arg6[%c3_i32_31, %c0_i32_33, %c0_i32_34] : memref<4x1x128xf32, #tpu.memory_space<vmem>> -> memref<1x1x128xf32, #tpu.memory_space<vmem>>
    %69 = tpu.memref_squeeze %68 : memref<1x1x128xf32, #tpu.memory_space<vmem>> -> memref<1x128xf32, #tpu.memory_space<vmem>>
    %70 = tpu.memref_slice %arg7[%c3_i32_32] : memref<4x!tpu.dma_semaphore, #tpu.memory_space<semaphore_mem>> -> memref<1x!tpu.dma_semaphore, #tpu.memory_space<semaphore_mem>>
    %71 = tpu.memref_squeeze %70 : memref<1x!tpu.dma_semaphore, #tpu.memory_space<semaphore_mem>> -> memref<!tpu.dma_semaphore, #tpu.memory_space<semaphore_mem>>
    tpu.enqueue_dma source(%67 : memref<1x128xf32, #tpu.memory_space<any>>) target(%69 : memref<1x128xf32, #tpu.memory_space<vmem>>) target_semaphore(%71 : memref<!tpu.dma_semaphore, #tpu.memory_space<semaphore_mem>>)
    %72 = tpu.iota {dimensions = array<i32: 1>} : vector<1x128xi32>
    %cst = arith.constant 0.000000e+00 : f32
    %73 = vector.broadcast %cst : f32 to vector<1x128xf32>
    %cst_35 = arith.constant 0.000000e+00 : f32
    %74 = vector.broadcast %cst_35 : f32 to vector<1x128xf32>
    %c0_i32_36 = arith.constant 0 : i32
    %c0_i32_37 = arith.constant 0 : i32
    %75 = tpu.memref_slice %arg4[%3, %8] : memref<4x512xf32, #tpu.memory_space<any>> -> memref<1x128xf32, #tpu.memory_space<any>>
    %c0_i32_38 = arith.constant 0 : i32
    %c0_i32_39 = arith.constant 0 : i32
    %76 = tpu.memref_slice %arg6[%c0_i32_36, %c0_i32_38, %c0_i32_39] : memref<4x1x128xf32, #tpu.memory_space<vmem>> -> memref<1x1x128xf32, #tpu.memory_space<vmem>>
    %77 = tpu.memref_squeeze %76 : memref<1x1x128xf32, #tpu.memory_space<vmem>> -> memref<1x128xf32, #tpu.memory_space<vmem>>
    %78 = tpu.memref_slice %arg7[%c0_i32_37] : memref<4x!tpu.dma_semaphore, #tpu.memory_space<semaphore_mem>> -> memref<1x!tpu.dma_semaphore, #tpu.memory_space<semaphore_mem>>
    %79 = tpu.memref_squeeze %78 : memref<1x!tpu.dma_semaphore, #tpu.memory_space<semaphore_mem>> -> memref<!tpu.dma_semaphore, #tpu.memory_space<semaphore_mem>>
    tpu.wait_dma2 semaphore(%79 : memref<!tpu.dma_semaphore, #tpu.memory_space<semaphore_mem>>) src(%75 : memref<1x128xf32, #tpu.memory_space<any>>) dst(%77 : memref<1x128xf32, #tpu.memory_space<vmem>>)
    %80 = vector.broadcast %12 : i32 to vector<1x128xi32>
    %81 = arith.cmpi sge, %72, %80 : vector<1x128xi32>
    %c64_i32 = arith.constant 64 : i32
    %82 = arith.addi %12, %c64_i32 : i32
    %83 = vector.broadcast %82 : i32 to vector<1x128xi32>
    %84 = arith.cmpi slt, %72, %83 : vector<1x128xi32>
    %85 = arith.andi %81, %84 : vector<1x128xi1>
    %c0 = arith.constant 0 : index
    %c0_40 = arith.constant 0 : index
    %c0_41 = arith.constant 0 : index
    %86 = vector.load %arg6[%c0, %c0_40, %c0_41] : memref<4x1x128xf32, #tpu.memory_space<vmem>>, vector<1x1x128xf32>
    %87 = vector.shape_cast %86 : vector<1x1x128xf32> to vector<1x128xf32>
    %cst_42 = arith.constant 0.000000e+00 : f32
    %88 = vector.broadcast %cst_42 : f32 to vector<1x128xf32>
    %89 = arith.select %85, %87, %88 : vector<1x128xi1>, vector<1x128xf32>
    %90 = arith.addf %73, %89 : vector<1x128xf32>
    %91 = arith.extui %85 : vector<1x128xi1> to vector<1x128xi32>
    %92 = arith.sitofp %91 : vector<1x128xi32> to vector<1x128xf32>
    %93 = arith.addf %74, %92 : vector<1x128xf32>
    %c1_i32_43 = arith.constant 1 : i32
    %c1_i32_44 = arith.constant 1 : i32
    %94 = tpu.memref_slice %arg4[%21, %26] : memref<4x512xf32, #tpu.memory_space<any>> -> memref<1x128xf32, #tpu.memory_space<any>>
    %c0_i32_45 = arith.constant 0 : i32
    %c0_i32_46 = arith.constant 0 : i32
    %95 = tpu.memref_slice %arg6[%c1_i32_43, %c0_i32_45, %c0_i32_46] : memref<4x1x128xf32, #tpu.memory_space<vmem>> -> memref<1x1x128xf32, #tpu.memory_space<vmem>>
    %96 = tpu.memref_squeeze %95 : memref<1x1x128xf32, #tpu.memory_space<vmem>> -> memref<1x128xf32, #tpu.memory_space<vmem>>
    %97 = tpu.memref_slice %arg7[%c1_i32_44] : memref<4x!tpu.dma_semaphore, #tpu.memory_space<semaphore_mem>> -> memref<1x!tpu.dma_semaphore, #tpu.memory_space<semaphore_mem>>
    %98 = tpu.memref_squeeze %97 : memref<1x!tpu.dma_semaphore, #tpu.memory_space<semaphore_mem>> -> memref<!tpu.dma_semaphore, #tpu.memory_space<semaphore_mem>>
    tpu.wait_dma2 semaphore(%98 : memref<!tpu.dma_semaphore, #tpu.memory_space<semaphore_mem>>) src(%94 : memref<1x128xf32, #tpu.memory_space<any>>) dst(%96 : memref<1x128xf32, #tpu.memory_space<vmem>>)
    %99 = vector.broadcast %30 : i32 to vector<1x128xi32>
    %100 = arith.cmpi sge, %72, %99 : vector<1x128xi32>
    %c64_i32_47 = arith.constant 64 : i32
    %101 = arith.addi %30, %c64_i32_47 : i32
    %102 = vector.broadcast %101 : i32 to vector<1x128xi32>
    %103 = arith.cmpi slt, %72, %102 : vector<1x128xi32>
    %104 = arith.andi %100, %103 : vector<1x128xi1>
    %c1 = arith.constant 1 : index
    %c0_48 = arith.constant 0 : index
    %c0_49 = arith.constant 0 : index
    %105 = vector.load %arg6[%c1, %c0_48, %c0_49] : memref<4x1x128xf32, #tpu.memory_space<vmem>>, vector<1x1x128xf32>
    %106 = vector.shape_cast %105 : vector<1x1x128xf32> to vector<1x128xf32>
    %cst_50 = arith.constant 0.000000e+00 : f32
    %107 = vector.broadcast %cst_50 : f32 to vector<1x128xf32>
    %108 = arith.select %104, %106, %107 : vector<1x128xi1>, vector<1x128xf32>
    %109 = arith.addf %90, %108 : vector<1x128xf32>
    %110 = arith.extui %104 : vector<1x128xi1> to vector<1x128xi32>
    %111 = arith.sitofp %110 : vector<1x128xi32> to vector<1x128xf32>
    %112 = arith.addf %93, %111 : vector<1x128xf32>
    %c2_i32_51 = arith.constant 2 : i32
    %c2_i32_52 = arith.constant 2 : i32
    %113 = tpu.memref_slice %arg4[%39, %44] : memref<4x512xf32, #tpu.memory_space<any>> -> memref<1x128xf32, #tpu.memory_space<any>>
    %c0_i32_53 = arith.constant 0 : i32
    %c0_i32_54 = arith.constant 0 : i32
    %114 = tpu.memref_slice %arg6[%c2_i32_51, %c0_i32_53, %c0_i32_54] : memref<4x1x128xf32, #tpu.memory_space<vmem>> -> memref<1x1x128xf32, #tpu.memory_space<vmem>>
    %115 = tpu.memref_squeeze %114 : memref<1x1x128xf32, #tpu.memory_space<vmem>> -> memref<1x128xf32, #tpu.memory_space<vmem>>
    %116 = tpu.memref_slice %arg7[%c2_i32_52] : memref<4x!tpu.dma_semaphore, #tpu.memory_space<semaphore_mem>> -> memref<1x!tpu.dma_semaphore, #tpu.memory_space<semaphore_mem>>
    %117 = tpu.memref_squeeze %116 : memref<1x!tpu.dma_semaphore, #tpu.memory_space<semaphore_mem>> -> memref<!tpu.dma_semaphore, #tpu.memory_space<semaphore_mem>>
    tpu.wait_dma2 semaphore(%117 : memref<!tpu.dma_semaphore, #tpu.memory_space<semaphore_mem>>) src(%113 : memref<1x128xf32, #tpu.memory_space<any>>) dst(%115 : memref<1x128xf32, #tpu.memory_space<vmem>>)
    %118 = vector.broadcast %48 : i32 to vector<1x128xi32>
    %119 = arith.cmpi sge, %72, %118 : vector<1x128xi32>
    %c64_i32_55 = arith.constant 64 : i32
    %120 = arith.addi %48, %c64_i32_55 : i32
    %121 = vector.broadcast %120 : i32 to vector<1x128xi32>
    %122 = arith.cmpi slt, %72, %121 : vector<1x128xi32>
    %123 = arith.andi %119, %122 : vector<1x128xi1>
    %c2 = arith.constant 2 : index
    %c0_56 = arith.constant 0 : index
    %c0_57 = arith.constant 0 : index
    %124 = vector.load %arg6[%c2, %c0_56, %c0_57] : memref<4x1x128xf32, #tpu.memory_space<vmem>>, vector<1x1x128xf32>
    %125 = vector.shape_cast %124 : vector<1x1x128xf32> to vector<1x128xf32>
    %cst_58 = arith.constant 0.000000e+00 : f32
    %126 = vector.broadcast %cst_58 : f32 to vector<1x128xf32>
    %127 = arith.select %123, %125, %126 : vector<1x128xi1>, vector<1x128xf32>
    %128 = arith.addf %109, %127 : vector<1x128xf32>
    %129 = arith.extui %123 : vector<1x128xi1> to vector<1x128xi32>
    %130 = arith.sitofp %129 : vector<1x128xi32> to vector<1x128xf32>
    %131 = arith.addf %112, %130 : vector<1x128xf32>
    %c3_i32_59 = arith.constant 3 : i32
    %c3_i32_60 = arith.constant 3 : i32
    %132 = tpu.memref_slice %arg4[%57, %62] : memref<4x512xf32, #tpu.memory_space<any>> -> memref<1x128xf32, #tpu.memory_space<any>>
    %c0_i32_61 = arith.constant 0 : i32
    %c0_i32_62 = arith.constant 0 : i32
    %133 = tpu.memref_slice %arg6[%c3_i32_59, %c0_i32_61, %c0_i32_62] : memref<4x1x128xf32, #tpu.memory_space<vmem>> -> memref<1x1x128xf32, #tpu.memory_space<vmem>>
    %134 = tpu.memref_squeeze %133 : memref<1x1x128xf32, #tpu.memory_space<vmem>> -> memref<1x128xf32, #tpu.memory_space<vmem>>
    %135 = tpu.memref_slice %arg7[%c3_i32_60] : memref<4x!tpu.dma_semaphore, #tpu.memory_space<semaphore_mem>> -> memref<1x!tpu.dma_semaphore, #tpu.memory_space<semaphore_mem>>
    %136 = tpu.memref_squeeze %135 : memref<1x!tpu.dma_semaphore, #tpu.memory_space<semaphore_mem>> -> memref<!tpu.dma_semaphore, #tpu.memory_space<semaphore_mem>>
    tpu.wait_dma2 semaphore(%136 : memref<!tpu.dma_semaphore, #tpu.memory_space<semaphore_mem>>) src(%132 : memref<1x128xf32, #tpu.memory_space<any>>) dst(%134 : memref<1x128xf32, #tpu.memory_space<vmem>>)
    %137 = vector.broadcast %66 : i32 to vector<1x128xi32>
    %138 = arith.cmpi sge, %72, %137 : vector<1x128xi32>
    %c64_i32_63 = arith.constant 64 : i32
    %139 = arith.addi %66, %c64_i32_63 : i32
    %140 = vector.broadcast %139 : i32 to vector<1x128xi32>
    %141 = arith.cmpi slt, %72, %140 : vector<1x128xi32>
    %142 = arith.andi %138, %141 : vector<1x128xi1>
    %c3 = arith.constant 3 : index
    %c0_64 = arith.constant 0 : index
    %c0_65 = arith.constant 0 : index
    %143 = vector.load %arg6[%c3, %c0_64, %c0_65] : memref<4x1x128xf32, #tpu.memory_space<vmem>>, vector<1x1x128xf32>
    %144 = vector.shape_cast %143 : vector<1x1x128xf32> to vector<1x128xf32>
    %cst_66 = arith.constant 0.000000e+00 : f32
    %145 = vector.broadcast %cst_66 : f32 to vector<1x128xf32>
    %146 = arith.select %142, %144, %145 : vector<1x128xi1>, vector<1x128xf32>
    %147 = arith.addf %128, %146 : vector<1x128xf32>
    %148 = arith.extui %142 : vector<1x128xi1> to vector<1x128xi32>
    %149 = arith.sitofp %148 : vector<1x128xi32> to vector<1x128xf32>
    %150 = arith.addf %131, %149 : vector<1x128xf32>
    %cst_67 = arith.constant 1.000000e+00 : f32
    %151 = vector.broadcast %cst_67 : f32 to vector<1x128xf32>
    %152 = arith.maximumf %150, %151 : vector<1x128xf32>
    %153 = arith.divf %147, %152 : vector<1x128xf32>
    %c0_68 = arith.constant 0 : index
    %c0_69 = arith.constant 0 : index
    %154 = vector.load %arg5[%c0_68, %c0_69] : memref<1x128xf32, #tpu.memory_space<vmem>>, vector<1x128xf32>
    tpu.vector_store %arg5[%c0_68, %c0_69], %153 {strides = array<i32>} : memref<1x128xf32, #tpu.memory_space<vmem>>, vector<1x128xf32>,
    return
  }
  func.func @transform_1(%arg0: i32, %arg1: memref<8xi32, #tpu.memory_space<smem>>, %arg2: memref<8xi32, #tpu.memory_space<smem>>, %arg3: memref<8xi32, #tpu.memory_space<smem>>) -> (i32, i32) {
    %c0_i32 = arith.constant 0 : i32
    %c0_i32_0 = arith.constant 0 : i32
    return %c0_i32, %arg0 : i32, i32
  }
}

</mosaic_0001>

<llo_original>
// kernel: tpu_custom_call.1
$region0: #{tpu_custom_call.1}
  #allocation0 [shape = 'u32[]', space=smem, size = 0x4, offset = 0x4, fixed_abs, tag = 'smem constant byte address 0x4 - core index']
  #allocation1 [shape = 'u32[144,128]{1,0:T(1,128)}', space=vmem, size = 0x12000, scoped, tag = 'internal scratch']
  #allocation2 [shape = 'f32[4,1,128]{2,1,0:T(1,128)}', space=vmem, size = 0x800, scoped, tag = 'scratch operand']
  #allocation3 [shape = 's32[4]{0}', space=sflag, size = 0x10, scoped, tag = 'scratch operand']
  #allocation4 [shape = 's32[1]{0}', space=sflag, size = 0x4, scoped, tag = 'scoped memory for tpu_custom_call.1']
  #allocation5 [shape = 'u8[512]{0}', space=smem, size = 0x200, scoped, tag = 'prefetched SMEM operand 0']
  #allocation6 [shape = 'u8[512]{0}', space=smem, size = 0x200, scoped, tag = 'prefetched SMEM operand 1']
  #allocation7 [shape = 'u8[512]{0}', space=smem, size = 0x200, scoped, tag = 'prefetched SMEM operand 2']
  #allocation10 [shape = 's32[]', space=sflag, size = 0x4, offset = 0, fixed_abs, tag = 'sflag constant byte address 0x0 - dummy sync flag']
  #allocation11 [shape = 's32[]', space=sflag, size = 0x4, offset = 0, fixed_abs, tag = 'sflag constant byte address 0x0 - dummy sync flag']
  #allocation12 [shape = 'u32[]', space=smem, size = 0x4, offset = 0x44, fixed_abs, tag = 'smem constant byte address 0x44 - assertion arg 0']
  #allocation13 [shape = 'u32[]', space=smem, size = 0x4, offset = 0x48, fixed_abs, tag = 'smem constant byte address 0x48 - assertion arg 1']
  #allocation14 [shape = 's32[]', space=sflag, size = 0x4, offset = 0, fixed_abs, tag = 'sflag constant byte address 0x0 - dummy sync flag']
  #allocation15 [shape = 's32[]', space=sflag, size = 0x4, offset = 0, fixed_abs, tag = 'sflag constant byte address 0x0 - dummy sync flag']
  #allocation16 [shape = 's32[]', space=sflag, size = 0x4, offset = 0, fixed_abs, tag = 'sflag constant byte address 0x0 - dummy sync flag']
  #allocation17 [shape = 's32[]', space=sflag, size = 0x4, offset = 0, fixed_abs, tag = 'sflag constant byte address 0x0 - dummy sync flag']
  #allocation18 [shape = 's32[]', space=sflag, size = 0x4, offset = 0, fixed_abs, tag = 'sflag constant byte address 0x0 - dummy sync flag']
  #allocation19 [shape = 's32[]', space=sflag, size = 0x4, offset = 0, fixed_abs, tag = 'sflag constant byte address 0x0 - dummy sync flag']
  %s0 = inlined_call_operand.hbm [shape: s32[8], index: 0, kind: input, shape index: {}]
  %s1 = inlined_call_operand.vmem [shape: s32[8], index: 1, kind: input, shape index: {}]
  %s2 = inlined_call_operand.vmem [shape: s32[8], index: 2, kind: input, shape index: {}]
  %s3 = inlined_call_operand.hbm [shape: f32[4,512], index: 3, kind: input, shape index: {}]
  %s4 = inlined_call_operand.hbm [shape: f32[1,256], index: 4, kind: output, shape index: {}]
  %s5 = sld [smem:[#allocation0]]
  $region41: #{tpu_custom_call.1} parent=0
    _
  %s7 = ssub.s32 1, %s5
  %s8 = scalar_select 0, %s7, %s5
  %10 = dma.hbm_to_smem %s0, 16, [#allocation5], [#allocation4]
  %s11 = sshll.u32 %s1, 4
  %s12 = int_to_ptr.vmem [resolvable:$true] %s11
  %14 = dma.vmem_to_smem %s12, 16, [#allocation6], [#allocation4]
  %s15 = sshll.u32 %s2, 4
  %s16 = int_to_ptr.vmem [resolvable:$true] %s15
  %18 = dma.vmem_to_smem %s16, 16, [#allocation7], [#allocation4]
  %19 = dma.done [#allocation4], 48
  %20 = sfence
  $region1: #{tpu_custom_call.1} parent=0
    #allocation8 [shape = 'u8[1024]{0}', space=vmem, size = 0x400, scoped, tag = 'output window, operand 0']
    #allocation9 [shape = 's32[2]{0}', space=sflag, size = 0x8, scoped, tag = 'scoped memory for tpu_custom_call.1']
    %21 = vsyncpa [#allocation9], 0
    %s22 = scalar_lea.sflag [#allocation9], 1
    %23 = vsyncpa %s22, 0
    loop: start=0, step=1, limit=3
    $region2: #{tpu_custom_call.1} parent=1 // loop_pre_header
      _
    $region3: #{tpu_custom_call.1} parent=1 // loop_header
      %s25 = sphi 0, %s29
      %p26 = scmp.ge.s32.totalorder %s25, 3
      %s34 = sphi 0, %s36
      %s37 = sphi 0, %s34
      %s47 = sphi 0, %s37
    $region4: #{tpu_custom_call.1} parent=1 // loop_header_branch
      %28 = sbr.rel (%p26) target = $region8
    $region5: #{tpu_custom_call.1} parent=1 // loop_body
      %s30 = ssub.s32 %s25, 1
      %s31 = sadd.s32 %s25, 1
      %s32 = ssub.s32 %s25, %s31
      %p33 = scmp.eq.s32.totalorder %s32, 0
      %s35 = sadd.s32 %s34, 1
      %s36 = scalar_select %p33, %s34, %s35
      %p38 = pneg %p33
      %p39 = scmp.eq.s32.totalorder %s25, 1
      %p40 = por %p38, %p39
      %p41 = scmp.ne.s32.totalorder %s34, %s37
      %p42 = scmp.eq.s32.totalorder %s25, 0
      %p43 = por %p41, %p42
      %p44 = scmp.ne.s32.totalorder %s34, %s37
      %p45 = scmp.eq.s32.totalorder %s30, 1
      %p46 = por %p44, %p45
      %p48 = scmp.ne.s32.totalorder %s37, %s47
      %p49 = scmp.eq.s32.totalorder %s30, 0
      %p50 = por %p48, %p49
      %p51 = scmp.lt.s32.totalorder %s25, 2
      // Predicated region
      $region9: #{tpu_custom_call.1} parent=5 // pred_check
        %p52 = pneg %p51
      $region10: #{tpu_custom_call.1} parent=5 // pred_check_branch
        %54 = sbr.rel (%p52) target = $region12
      $region11: #{tpu_custom_call.1} parent=5 // pred_region
        %p55 = pneg %p43
        %p56 = pneg %p40
        %s57 = sand.u32 %s34, 1
        %s58 = scalar_lea.sflag [#allocation9], %s57
        %s59 = sand.u32 %s34, 1
        %s60 = scalar_lea.vmem [#allocation8], %s59
        %s61 = smul.u32 %s25, 4
        %s62 = sld [smem:[#allocation5 + %s61]]
        %s63 = sld [smem:[#allocation6 + %s61]]
        %s64 = sld [smem:[#allocation7 + %s61]]
        %s65 = sshrl.u32 %s62, 2
        %s66 = sand.u32 %s62, 3
        %s67 = smul.u32 %s65, 16
        %s68 = sadd.s32 %s66, %s67
        %s69 = sshra.s32 %s63, 7
        %s70 = sand.u32 %s63, 127
        %s71 = smul.u32 %s69, 4
        %s72 = sadd.s32 %s71, %s68
        %s73 = smul.addr %s72, 16
        %s74 = scalar_lea.hbm %s3, %s73
        // Predicated region
        $region13: #{tpu_custom_call.1} parent=11 // pred_check
          _
        $region14: #{tpu_custom_call.1} parent=11 // pred_check_branch
          %76 = sbr.rel target = $region16
        $region15: #{tpu_custom_call.1} parent=11 // pred_region
          %77 = sst [smem:[#allocation12]] [#allocation11]
          %78 = sst [smem:[#allocation13]] [#allocation10]
        $region16: #{tpu_custom_call.1} parent=11 // pred_fallthru
          _
        %80 = shalt.err (0)
        %s82 = sshll.u32 [#allocation2], 4
        %s83 = int_to_ptr.vmem [resolvable:$true] %s82
        %85 = dma.hbm_to_vmem [thread:$0]  %s74, 16, %s83, [#allocation3]
        %s86 = sadd.s32 %s61, 1
        %s87 = sld [smem:[#allocation5 + %s86]]
        %s88 = sld [smem:[#allocation6 + %s86]]
        %s89 = sld [smem:[#allocation7 + %s86]]
        %s90 = sshrl.u32 %s87, 2
        %s91 = sand.u32 %s87, 3
        %s92 = smul.u32 %s90, 16
        %s93 = sadd.s32 %s91, %s92
        %s94 = sshra.s32 %s88, 7
        %s95 = sand.u32 %s88, 127
        %s96 = smul.u32 %s94, 4
        %s97 = sadd.s32 %s96, %s93
        %s98 = smul.addr %s97, 16
        %s99 = scalar_lea.hbm %s3, %s98
        %s100 = scalar_lea.vmem [#allocation2], 1
        %s101 = scalar_lea.sflag [#allocation3], 1
        // Predicated region
        $region17: #{tpu_custom_call.1} parent=11 // pred_check
          _
        $region18: #{tpu_custom_call.1} parent=11 // pred_check_branch
          %103 = sbr.rel target = $region20
        $region19: #{tpu_custom_call.1} parent=11 // pred_region
          %104 = sst [smem:[#allocation12]] [#allocation15]
          %105 = sst [smem:[#allocation13]] [#allocation14]
        $region20: #{tpu_custom_call.1} parent=11 // pred_fallthru
          _
        %107 = shalt.err (0)
        %s109 = sshll.u32 %s100, 4
        %s110 = int_to_ptr.vmem [resolvable:$true] %s109
        %112 = dma.hbm_to_vmem [thread:$0]  %s99, 16, %s110, %s101
        %s113 = sadd.s32 %s61, 2
        %s114 = sld [smem:[#allocation5 + %s113]]
        %s115 = sld [smem:[#allocation6 + %s113]]
        %s116 = sld [smem:[#allocation7 + %s113]]
        %s117 = sshrl.u32 %s114, 2
        %s118 = sand.u32 %s114, 3
        %s119 = smul.u32 %s117, 16
        %s120 = sadd.s32 %s118, %s119
        %s121 = sshra.s32 %s115, 7
        %s122 = sand.u32 %s115, 127
        %s123 = smul.u32 %s121, 4
        %s124 = sadd.s32 %s123, %s120
        %s125 = smul.addr %s124, 16
        %s126 = scalar_lea.hbm %s3, %s125
        %s127 = scalar_lea.vmem [#allocation2], 2
        %s128 = scalar_lea.sflag [#allocation3], 2
        // Predicated region
        $region21: #{tpu_custom_call.1} parent=11 // pred_check
          _
        $region22: #{tpu_custom_call.1} parent=11 // pred_check_branch
          %130 = sbr.rel target = $region24
        $region23: #{tpu_custom_call.1} parent=11 // pred_region
          %131 = sst [smem:[#allocation12]] [#allocation17]
          %132 = sst [smem:[#allocation13]] [#allocation16]
        $region24: #{tpu_custom_call.1} parent=11 // pred_fallthru
          _
        %134 = shalt.err (0)
        %s136 = sshll.u32 %s127, 4
        %s137 = int_to_ptr.vmem [resolvable:$true] %s136
        %139 = dma.hbm_to_vmem [thread:$0]  %s126, 16, %s137, %s128
        %s140 = sadd.s32 %s61, 3
        %s141 = sld [smem:[#allocation5 + %s140]]
        %s142 = sld [smem:[#allocation6 + %s140]]
        %s143 = sld [smem:[#allocation7 + %s140]]
        %s144 = sshrl.u32 %s141, 2
        %s145 = sand.u32 %s141, 3
        %s146 = smul.u32 %s144, 16
        %s147 = sadd.s32 %s145, %s146
        %s148 = sshra.s32 %s142, 7
        %s149 = sand.u32 %s142, 127
        %s150 = smul.u32 %s148, 4
        %s151 = sadd.s32 %s150, %s147
        %s152 = smul.addr %s151, 16
        %s153 = scalar_lea.hbm %s3, %s152
        %s154 = scalar_lea.vmem [#allocation2], 3
        %s155 = scalar_lea.sflag [#allocation3], 3
        // Predicated region
        $region25: #{tpu_custom_call.1} parent=11 // pred_check
          _
        $region26: #{tpu_custom_call.1} parent=11 // pred_check_branch
          %157 = sbr.rel target = $region28
        $region27: #{tpu_custom_call.1} parent=11 // pred_region
          %158 = sst [smem:[#allocation12]] [#allocation19]
          %159 = sst [smem:[#allocation13]] [#allocation18]
        $region28: #{tpu_custom_call.1} parent=11 // pred_fallthru
          _
        %161 = shalt.err (0)
        %s163 = sshll.u32 %s154, 4
        %s164 = int_to_ptr.vmem [resolvable:$true] %s163
        %166 = dma.hbm_to_vmem [thread:$0]  %s153, 16, %s164, %s155
        %v167 = vlaneseq
        %v168 = vand.u32 %v167, 127
        %s169 = smul.u32 1, 1
        %s170 = sshll.u32 %s169, 4
        %171 = dma.done [#allocation3], %s170
        %v172 = vstv %s64
        %vm173 = vcmp.ge.s32.totalorder %v168, %v172
        %s174 = sadd.s32 %s64, 64
        %v175 = vstv %s174
        %vm176 = vcmp.lt.s32.totalorder %v168, %v175
        %vm177 = vmand %vm173, %vm176
        %v178 = vld [vmem:[#allocation2] sm:$0x1]
        %v179 = vsel %vm177, %v178, 0.0
        %v180 = vadd.f32 %v179, 0.0
        %v181 = vsel %vm177, 1, 0
        %v182 = vcvt.s32.f32 %v181
        %v183 = vadd.f32 %v182, 0.0
        %s184 = sshll.u32 %s169, 4
        %185 = dma.done %s101, %s184
        %v186 = vstv %s89
        %vm187 = vcmp.ge.s32.totalorder %v168, %v186
        %s188 = sadd.s32 %s89, 64
        %v189 = vstv %s188
        %vm190 = vcmp.lt.s32.totalorder %v168, %v189
        %vm191 = vmand %vm187, %vm190
        %v192 = vld [vmem:[%s100] sm:$0x1]
        %v193 = vsel %vm191, %v192, 0.0
        %v194 = vadd.f32 %v180, %v193
        %v195 = vsel %vm191, 1, 0
        %v196 = vcvt.s32.f32 %v195
        %v197 = vadd.f32 %v183, %v196
        %s198 = sshll.u32 %s169, 4
        %199 = dma.done %s128, %s198
        %v200 = vstv %s116
        %vm201 = vcmp.ge.s32.totalorder %v168, %v200
        %s202 = sadd.s32 %s116, 64
        %v203 = vstv %s202
        %vm204 = vcmp.lt.s32.totalorder %v168, %v203
        %vm205 = vmand %vm201, %vm204
        %v206 = vld [vmem:[%s127] sm:$0x1]
        %v207 = vsel %vm205, %v206, 0.0
        %v208 = vadd.f32 %v194, %v207
        %v209 = vsel %vm205, 1, 0
        %v210 = vcvt.s32.f32 %v209
        %v211 = vadd.f32 %v197, %v210
        %s212 = sshll.u32 %s169, 4
        %213 = dma.done %s155, %s212
        %v214 = vstv %s143
        %vm215 = vcmp.ge.s32.totalorder %v168, %v214
        %s216 = sadd.s32 %s143, 64
        %v217 = vstv %s216
        %vm218 = vcmp.lt.s32.totalorder %v168, %v217
        %vm219 = vmand %vm215, %vm218
        %v220 = vld [vmem:[%s154] sm:$0x1]
        %v221 = vsel %vm219, %v220, 0.0
        %v222 = vadd.f32 %v208, %v221
        %v223 = vsel %vm219, 1, 0
        %v224 = vcvt.s32.f32 %v223
        %v225 = vadd.f32 %v211, %v224
        %v226 = vmax.f32 %v225, 1.0
        %v227 = vrcp.pop %v226
        %v228 = vmul.f32 %v222, %v227
        %229 = vst [vmem:[%s60] sm:$0x1] %v228
        %s230 = sand.u32 %s34, 1
        %s231 = scalar_lea.sflag [#allocation9], %s230
        %s232 = sand.u32 %s34, 1
        %s233 = scalar_lea.vmem [#allocation8], %s232
        // Predicated region
        $region29: #{tpu_custom_call.1} parent=11 // pred_check
          %p234 = pneg %p40
        $region30: #{tpu_custom_call.1} parent=11 // pred_check_branch
          %236 = sbr.rel (%p234) target = $region32
        $region31: #{tpu_custom_call.1} parent=11 // pred_region
          %s238 = ssub.s32 16, 16
          %239 = vsyncadd %s231, %s238
          %s240 = smul.addr %s25, 16
          %s241 = scalar_lea.hbm %s4, %s240
          %s243 = sshll.u32 %s233, 4
          %s244 = int_to_ptr.vmem [resolvable:$true] %s243
          %246 = dma.vmem_to_hbm [thread:$0]  %s244, 16, %s241, %s231
        $region32: #{tpu_custom_call.1} parent=11 // pred_fallthru
          _
      $region12: #{tpu_custom_call.1} parent=5 // pred_fallthru
        _
      %p247 = scmp.le.s32.totalorder 1, %s25
      // Predicated region
      $region33: #{tpu_custom_call.1} parent=5 // pred_check
        %p248 = pneg %p247
      $region34: #{tpu_custom_call.1} parent=5 // pred_check_branch
        %250 = sbr.rel (%p248) target = $region36
      $region35: #{tpu_custom_call.1} parent=5 // pred_region
        %s251 = ssub.s32 %s25, 1
        // Predicated region
        $region37: #{tpu_custom_call.1} parent=35 // pred_check
          %p252 = pneg %p46
        $region38: #{tpu_custom_call.1} parent=35 // pred_check_branch
          %254 = sbr.rel (%p252) target = $region40
        $region39: #{tpu_custom_call.1} parent=35 // pred_region
          %s255 = sand.u32 %s37, 1
          %s256 = scalar_lea.sflag [#allocation9], %s255
          %s257 = sand.u32 %s37, 1
          %s258 = scalar_lea.vmem [#allocation8], %s257
          %259 = dma.done %s256, 16
        $region40: #{tpu_custom_call.1} parent=35 // pred_fallthru
          _
      $region36: #{tpu_custom_call.1} parent=5 // pred_fallthru
        _
    $region6: #{tpu_custom_call.1} parent=1 // loop_footer
      %s29 = sadd.s32 1, %s25
    $region7: #{tpu_custom_call.1} parent=1 // loop_footer_branch
      %24 = sbr.rel target = $region3
    $region8: #{tpu_custom_call.1} parent=1 // loop_exit
      _
    %260 = vsyncpa [#allocation9], 1
    %s261 = scalar_lea.sflag [#allocation9], 1
    %262 = vsyncpa %s261, 1
  %263 = vsyncmov [#allocation3]
  %s264 = vpop.sfrf %263
  %p265 = scmp.eq.s32.totalorder %s264, 0
  %p266 = pneg %p265
  %268 = shalt.err (%p266)
  %s269 = scalar_lea.sflag [#allocation3], 1
  %270 = vsyncmov %s269
  %s271 = vpop.sfrf %270
  %p272 = scmp.eq.s32.totalorder %s271, 0
  %p273 = pneg %p272
  %275 = shalt.err (%p273)
  %s276 = scalar_lea.sflag [#allocation3], 2
  %277 = vsyncmov %s276
  %s278 = vpop.sfrf %277
  %p279 = scmp.eq.s32.totalorder %s278, 0
  %p280 = pneg %p279
  %282 = shalt.err (%p280)
  %s283 = scalar_lea.sflag [#allocation3], 3
  %284 = vsyncmov %s283
  %s285 = vpop.sfrf %284
  %p286 = scmp.eq.s32.totalorder %s285, 0
  %p287 = pneg %p286
  %289 = shalt.err (%p287)

</llo_original>
